<compile_context>
chip_gen: v7x
topology: tpu7x:2x2x1
jax: 0.10.0
libtpu: 0.0.40
codegen_flags: <defaults>
</compile_context>

<pallas_src>
import functools

import jax
import jax.numpy as jnp
from jax.experimental import pallas as pl
from jax.experimental.pallas import tpu as pltpu


def _round_up(x, m):
    return ((x + m - 1) // m) * m


def _vmem_cap_bytes():
    """Generation-aware VMEM budget cap (v5e/v6e: 128 MiB, v7x: 64 MiB per TC)."""
    try:
        return int(0.85 * pltpu.get_tpu_info().vmem_capacity_bytes)
    except Exception:
        return 48 * 1024 * 1024  # conservative fallback, fits every generation


def _lstm_cell_from_gates(gates, H):
    """PyTorch gate order i,f,g,o; c_prev = 0 so the forget-gate term is dead."""
    i = jax.nn.sigmoid(gates[:, 0 * H:1 * H])
    g = jnp.tanh(gates[:, 2 * H:3 * H])
    o = jax.nn.sigmoid(gates[:, 3 * H:4 * H])
    return o * jnp.tanh(i * g)


# --------------- call 1: gates1 = x @ W1 + b1 (HBM-streaming hot loop) ---------

def gates1_kernel(x_ref, w1_ref, b1_ref, g_ref, acc_ref, *, tk):
    """Grid: (column-split j [parallel], K-tile k [arbitrary]).

    x is fully resident in VMEM; W1 is streamed in (tk, Hg) tiles where Hg is
    this core's slice of the 4*Hp gate columns.  acc_ref accumulates this
    core's (S, Hg) slice of gates1 in f32; the bias is added on the last tile.
    """
    k = pl.program_id(1)

    @pl.when(k == 0)
    def _init():
        acc_ref[...] = jnp.zeros_like(acc_ref)

    # Hot path: (S, tk) x (tk, Hg) on the MXU, f32 accumulation.
    start = pl.multiple_of(k * tk, tk)
    x_blk = x_ref[:, pl.ds(start, tk)]
    acc_ref[...] += jnp.dot(x_blk, w1_ref[...],
                            preferred_element_type=jnp.float32)

    @pl.when(k == pl.num_programs(1) - 1)
    def _finalize():
        g_ref[...] = acc_ref[...] + b1_ref[...]


# --------------- call 2: tiny epilogue (both LSTM cells + linear head) ---------

def epilogue_kernel(g1_ref, w2_ref, b2_ref, wfc_ref, bfc_ref, out_ref):
    Hp = w2_ref.shape[0]  # padded hidden size
    # ---- LSTM layer 1 (single time step, zero initial state) ----
    h1 = _lstm_cell_from_gates(g1_ref[...], Hp)
    # ---- LSTM layer 2 ----
    gates2 = jnp.dot(h1.astype(w2_ref.dtype), w2_ref[...],
                     preferred_element_type=jnp.float32) + b2_ref[...]
    h2 = _lstm_cell_from_gates(gates2, Hp)
    # ---- Linear head ----
    out = jnp.dot(h2.astype(wfc_ref.dtype), wfc_ref[...],
                  preferred_element_type=jnp.float32) + bfc_ref[...]
    out_ref[...] = out.astype(out_ref.dtype)


def net_forward(x, params, *, tk=4096, stream_dtype=jnp.bfloat16, col_splits=2):
    """x: (batch, input_size) float32.  Returns (batch, num_classes) float32.

    params are the "natural" pre-transposed weights from make_params; this
    wrapper pads them to lane-aligned shapes and picks the streaming layout.
    Multiple independent inputs should be folded into the batch dimension:
    the W1 streaming cost is independent of batch size.
    """
    w1, b1, w2, b2, wfc, bfc = params
    S, K = x.shape
    H = w2.shape[0]
    C = wfc.shape[1]
    assert w1.shape == (K, 4 * H)

    # ---- pad hidden/gate dims so every gate block is a multiple of 128 lanes ----
    Hp = _round_up(H, 128)

    def pad_gate_cols(w):
        # (..., 4H) -> (..., 4Hp); gate g occupies columns [g*Hp, g*Hp + H).
        parts = [w[..., g * H:(g + 1) * H] for g in range(4)]
        pad = [(0, 0)] * (w.ndim - 1) + [(0, Hp - H)]
        return jnp.concatenate([jnp.pad(p, pad) for p in parts], axis=-1)

    w1p = pad_gate_cols(w1)                                               # (K, 4Hp)
    b1p = pad_gate_cols(b1)                                               # (1, 4Hp) f32
    w2p = pad_gate_cols(jnp.pad(w2, ((0, Hp - H), (0, 0)))).astype(stream_dtype)
    b2p = pad_gate_cols(b2)                                               # (1, 4Hp) f32
    wfcp = jnp.pad(wfc, ((0, Hp - H), (0, 0))).astype(stream_dtype)       # (Hp, C)
    # Padded gate columns are all-zero -> padded h entries come out exactly 0,
    # so zero-padded W2/Wfc rows keep the math identical to the unpadded net.

    # ---- pad / tile the reduction (input_size) dimension ----
    tk = max(128, (tk // 128) * 128)
    Kp0 = _round_up(K, 128)
    tk_eff = min(tk, Kp0)
    Kp = _round_up(K, tk_eff)
    xp = jnp.pad(x, ((0, 0), (0, Kp - K))).astype(stream_dtype)
    w1p = jnp.pad(w1p, ((0, Kp - K), (0, 0))).astype(stream_dtype)

    # ---- split the 4*Hp gate columns across the leading ("parallel") grid axis ----
    assert (4 * Hp) % col_splits == 0
    Hg = (4 * Hp) // col_splits
    assert Hg % 128 == 0

    grid = (col_splits, Kp // tk_eff)
    s_item = jnp.dtype(stream_dtype).itemsize
    S8 = _round_up(S, 8)

    # Per-core VMEM budget: single-buffered resident x + double-buffered W1 tile
    # + bias block + gates accumulator + output block + headroom.
    vmem_bytes = int(
        S8 * Kp * s_item                # x (resident, single-buffered)
        + 2 * tk_eff * Hg * s_item      # W1 K-tile (double-buffered stream)
        + 2 * 8 * Hg * 4                # b1 block
        + S8 * Hg * 4                   # gates1 accumulator scratch
        + 2 * S8 * Hg * 4               # gates1 output block
        + (4 << 20))                    # headroom
    vmem_bytes = min(vmem_bytes, _vmem_cap_bytes())

    cost = pl.CostEstimate(
        flops=2 * S * Kp * 4 * Hp,
        transcendentals=0,
        bytes_accessed=int(xp.size * s_item + w1p.size * s_item
                           + b1p.size * 4 + S * 4 * Hp * 4))

    gates1 = pl.pallas_call(
        functools.partial(gates1_kernel, tk=tk_eff),
        out_shape=jax.ShapeDtypeStruct((S, 4 * Hp), jnp.float32),
        grid_spec=pltpu.PrefetchScalarGridSpec(
            num_scalar_prefetch=0,
            grid=grid,
            in_specs=[
                # x: fully resident, constant block index -> single-buffered.
                pl.BlockSpec((S, Kp), lambda j, k: (0, 0),
                             pipeline_mode=pl.Buffered(1)),
                # W1: K-tiled stream of this core's gate-column slice.
                pl.BlockSpec((tk_eff, Hg), lambda j, k: (k, j)),
                # b1: this core's slice of the combined bias.
                pl.BlockSpec((1, Hg), lambda j, k: (0, j)),
            ],
            out_specs=pl.BlockSpec((S, Hg), lambda j, k: (0, j)),
            scratch_shapes=[pltpu.VMEM((S, Hg), jnp.float32)],
        ),
        compiler_params=pltpu.CompilerParams(
            dimension_semantics=("parallel", "arbitrary"),
            vmem_limit_bytes=vmem_bytes),
        cost_estimate=cost,
    )(xp, w1p, b1p)

    # Tiny epilogue: everything fits trivially in VMEM; written once, microseconds
    # of work, so no tiling / output-store tuning on purpose.
    out = pl.pallas_call(
        epilogue_kernel,
        out_shape=jax.ShapeDtypeStruct((S, C), jnp.float32),
    )(gates1, w2p, b2p, wfcp, bfc)
    return out


def make_params(key, input_size, hidden, num_classes):
    """Deterministic synthetic params, PyTorch-style uniform(-1/sqrt(H), 1/sqrt(H))."""
    ks = jax.random.split(key, 6)
    bound = 1.0 / jnp.sqrt(hidden)

    def u(k, shape):
        return jax.random.uniform(k, shape, jnp.float32, -bound, bound)

    # Pre-transposed weights: (in_features, 4H) / (H, C).
    w1 = u(ks[0], (input_size, 4 * hidden))       # W_ih_l0^T
    b1 = u(ks[1], (1, 4 * hidden)) * 2.0          # b_ih_l0 + b_hh_l0 (combined)
    w2 = u(ks[2], (hidden, 4 * hidden))           # W_ih_l1^T
    b2 = u(ks[3], (1, 4 * hidden)) * 2.0          # b_ih_l1 + b_hh_l1 (combined)
    wfc = u(ks[4], (hidden, num_classes))         # lstm2tag weight^T
    bfc = u(ks[5], (1, num_classes))              # lstm2tag bias
    return (w1, b1, w2, b2, wfc, bfc)


def net_reference(x, params):
    """Pure-JAX f32 reference mirroring the PyTorch forward (eval mode)."""
    w1, b1, w2, b2, wfc, bfc = params
    H = w2.shape[0]

    def cell(gates):
        i = jax.nn.sigmoid(gates[:, 0 * H:1 * H])
        g = jnp.tanh(gates[:, 2 * H:3 * H])
        o = jax.nn.sigmoid(gates[:, 3 * H:4 * H])
        return o * jnp.tanh(i * g)

    h1 = cell(x @ w1 + b1)
    h2 = cell(h1 @ w2 + b2)
    return h2 @ wfc + bfc


if __name__ == "__main__":
    # Small shapes consistent with the module (original: input_size=131072,
    # hidden_size1=500, num_classes=8; x is (batch, input_size)).
    # Deliberately non-multiples of 128 to exercise the padding paths.
    BATCH, INPUT_SIZE, HIDDEN, NUM_CLASSES = 8, 1000, 96, 8

    key = jax.random.PRNGKey(0)
    kx, kp = jax.random.split(key)
    x = jax.random.normal(kx, (BATCH, INPUT_SIZE), jnp.float32)
    params = make_params(kp, INPUT_SIZE, HIDDEN, NUM_CLASSES)

    ref = net_reference(x, params)

    # f32 streaming path, small K-tile so the multi-step reduction + column split
    # are both exercised.
    out_f32 = jax.block_until_ready(
        net_forward(x, params, tk=256, stream_dtype=jnp.float32))
    assert out_f32.shape == (BATCH, NUM_CLASSES)
    assert jnp.allclose(out_f32, ref, atol=1e-4, rtol=1e-4), "f32 mismatch vs reference"

    # Default (bf16-streamed, large tile) path; tolerance loosened for bf16 weights.
    out_bf16 = jax.block_until_ready(net_forward(x, params))
    assert out_bf16.shape == (BATCH, NUM_CLASSES)
    assert jnp.allclose(out_bf16, ref, atol=5e-2, rtol=5e-2), "bf16 mismatch vs reference"

    print("KERNEL_OK")
</pallas_src>

<mosaic_0001>
module attributes {stable_mosaic.version = 11 : i64} {
  func.func @gates1_kernel(%arg0: i32, %arg1: i32, %arg2: memref<8x1024xf32, #tpu.memory_space<vmem>>, %arg3: memref<256x256xf32, #tpu.memory_space<vmem>>, %arg4: memref<1x256xf32, #tpu.memory_space<vmem>>, %arg5: memref<8x256xf32, #tpu.memory_space<vmem>>, %arg6: memref<8x256xf32, #tpu.memory_space<vmem>>) attributes {dimension_semantics = [#tpu.dimension_semantics<parallel>, #tpu.dimension_semantics<arbitrary>], iteration_bounds = array<i64: 2, 4>, scalar_prefetch = 0 : i64, scratch_operands = 1 : i64, tpu.core_type = #tpu.core_type<tc>, window_params = [{pipeline_mode = #tpu.pipeline_mode<synchronous>, transform_indices = @transform_0, window_bounds = array<i64: 8, 1024>}, {transform_indices = @transform_1, window_bounds = array<i64: 256, 256>}, {transform_indices = @transform_2, window_bounds = array<i64: 1, 256>}, {transform_indices = @transform_3, window_bounds = array<i64: 8, 256>}]} {
    %c0_i32 = arith.constant 0 : i32
    %0 = arith.cmpi eq, %arg1, %c0_i32 : i32
    %1 = arith.extui %0 : i1 to i32
    %c0_i32_0 = arith.constant 0 : i32
    %2 = arith.cmpi ne, %1, %c0_i32_0 : i32
    scf.if %2 {
      %cst_8 = arith.constant 0.000000e+00 : f32
      %15 = vector.broadcast %cst_8 : f32 to vector<8x256xf32>
      %c0_9 = arith.constant 0 : index
      %c0_10 = arith.constant 0 : index
      %16 = vector.load %arg6[%c0_9, %c0_10] : memref<8x256xf32, #tpu.memory_space<vmem>>, vector<8x256xf32>
      tpu.vector_store %arg6[%c0_9, %c0_10], %15 {strides = array<i32>} : memref<8x256xf32, #tpu.memory_space<vmem>>, vector<8x256xf32>,
    } else {
    }
    %c256_i32 = arith.constant 256 : i32
    %3 = arith.muli %arg1, %c256_i32 : i32
    %4 = tpu.assume_multiple %3, 256 : i32
    %c0 = arith.constant 0 : index
    %5 = arith.index_cast %4 : i32 to index
    %6 = vector.load %arg2[%c0, %5] : memref<8x1024xf32, #tpu.memory_space<vmem>>, vector<8x256xf32>
    %c0_1 = arith.constant 0 : index
    %c0_2 = arith.constant 0 : index
    %7 = vector.load %arg6[%c0_1, %c0_2] : memref<8x256xf32, #tpu.memory_space<vmem>>, vector<8x256xf32>
    %c0_3 = arith.constant 0 : index
    %c0_4 = arith.constant 0 : index
    %8 = vector.load %arg3[%c0_3, %c0_4] : memref<256x256xf32, #tpu.memory_space<vmem>>, vector<256x256xf32>
    %cst = arith.constant dense<0.000000e+00> : vector<8x256xf32>
    %9 = tpu.matmul %6, %8, %cst {dimension_numbers = #tpu.dot_dimension_numbers<[1], [0], [0], [1], [0, 0, 1, 1], [], []>} : vector<8x256xf32>, vector<256x256xf32>, vector<8x256xf32> -> vector<8x256xf32>
    %10 = arith.addf %7, %9 : vector<8x256xf32>
    %c0_5 = arith.constant 0 : index
    %c0_6 = arith.constant 0 : index
    %11 = vector.load %arg6[%c0_5, %c0_6] : memref<8x256xf32, #tpu.memory_space<vmem>>, vector<8x256xf32>
    tpu.vector_store %arg6[%c0_5, %c0_6], %10 {strides = array<i32>} : memref<8x256xf32, #tpu.memory_space<vmem>>, vector<8x256xf32>,
    %c3_i32 = arith.constant 3 : i32
    %12 = arith.cmpi eq, %arg1, %c3_i32 : i32
    %13 = arith.extui %12 : i1 to i32
    %c0_i32_7 = arith.constant 0 : i32
    %14 = arith.cmpi ne, %13, %c0_i32_7 : i32
    scf.if %14 {
      %c0_8 = arith.constant 0 : index
      %c0_9 = arith.constant 0 : index
      %15 = vector.load %arg6[%c0_8, %c0_9] : memref<8x256xf32, #tpu.memory_space<vmem>>, vector<8x256xf32>
      %c0_10 = arith.constant 0 : index
      %c0_11 = arith.constant 0 : index
      %16 = vector.load %arg4[%c0_10, %c0_11] : memref<1x256xf32, #tpu.memory_space<vmem>>, vector<1x256xf32>
      %17 = vector.broadcast %16 : vector<1x256xf32> to vector<8x256xf32>
      %18 = arith.addf %15, %17 : vector<8x256xf32>
      %c0_12 = arith.constant 0 : index
      %c0_13 = arith.constant 0 : index
      %19 = vector.load %arg5[%c0_12, %c0_13] : memref<8x256xf32, #tpu.memory_space<vmem>>, vector<8x256xf32>
      tpu.vector_store %arg5[%c0_12, %c0_13], %18 {strides = array<i32>} : memref<8x256xf32, #tpu.memory_space<vmem>>, vector<8x256xf32>,
    } else {
    }
    return
  }
  func.func @transform_0(%arg0: i32, %arg1: i32) -> (i32, i32) {
    %c0_i32 = arith.constant 0 : i32
    %c0_i32_0 = arith.constant 0 : i32
    %c0_i32_1 = arith.constant 0 : i32
    return %c0_i32, %c0_i32_0 : i32, i32
  }
  func.func @transform_1(%arg0: i32, %arg1: i32) -> (i32, i32) {
    %c0_i32 = arith.constant 0 : i32
    return %arg1, %arg0 : i32, i32
  }
  func.func @transform_2(%arg0: i32, %arg1: i32) -> (i32, i32) {
    %c0_i32 = arith.constant 0 : i32
    %c0_i32_0 = arith.constant 0 : i32
    return %c0_i32, %arg0 : i32, i32
  }
  func.func @transform_3(%arg0: i32, %arg1: i32) -> (i32, i32) {
    %c0_i32 = arith.constant 0 : i32
    %c0_i32_0 = arith.constant 0 : i32
    return %c0_i32, %arg0 : i32, i32
  }
}

</mosaic_0001>

<llo_original>
// kernel: tpu_custom_call.1
$region0: #{tpu_custom_call.1}
  #allocation0 [shape = 'u32[]', space=smem, size = 0x4, offset = 0x4, fixed_abs, tag = 'smem constant byte address 0x4 - core index']
  #allocation1 [shape = 'u32[144,128]{1,0:T(1,128)}', space=vmem, size = 0x12000, scoped, tag = 'internal scratch']
  #allocation2 [shape = 'f32[8,256]{1,0:T(8,128)}', space=vmem, size = 0x2000, scoped, tag = 'scratch operand']
  %s0 = inlined_call_operand.hbm [shape: f32[8,1024], index: 0, kind: input, shape index: {}]
  %s1 = inlined_call_operand.hbm [shape: f32[1024,512], index: 1, kind: input, shape index: {}]
  %s2 = inlined_call_operand.hbm [shape: f32[1,512], index: 2, kind: input, shape index: {}]
  %s3 = inlined_call_operand.hbm [shape: f32[8,512], index: 3, kind: output, shape index: {}]
  %s4 = sld [smem:[#allocation0]]
  $region65: #{tpu_custom_call.1} parent=0
    _
  %s6 = ssub.s32 1, %s4
  %s7 = scalar_select 0, %s6, %s4
  $region1: #{tpu_custom_call.1} parent=0
    #allocation3 [shape = 'u8[32768]{0}', space=vmem, size = 0x8000, scoped, tag = 'input window, operand 0, single buffered']
    #allocation4 [shape = 's32[2]{0}', space=sflag, size = 0x8, scoped, tag = 'scoped memory for tpu_custom_call.1']
    #allocation5 [shape = 's32[2]{0}', space=sflag, size = 0x8, scoped, tag = 'scoped memory for tpu_custom_call.1']
    #allocation6 [shape = 'u8[524288]{0}', space=vmem, size = 0x80000, scoped, tag = 'input window, operand 1']
    #allocation7 [shape = 's32[2]{0}', space=sflag, size = 0x8, scoped, tag = 'scoped memory for tpu_custom_call.1']
    #allocation8 [shape = 'u8[2048]{0}', space=vmem, size = 0x800, scoped, tag = 'input window, operand 2']
    #allocation9 [shape = 'u8[16384]{0}', space=vmem, size = 0x4000, scoped, tag = 'output window, operand 0']
    %8 = vsyncpa [#allocation4], 0
    %9 = vsyncpa [#allocation7], 0
    %s10 = scalar_lea.sflag [#allocation7], 1
    %11 = vsyncpa %s10, 0
    %12 = vsyncpa [#allocation5], 0
    %s13 = scalar_lea.sflag [#allocation5], 1
    %14 = vsyncpa %s13, 0
    loop: start=0, step=1, limit=10
    $region2: #{tpu_custom_call.1} parent=1 // loop_pre_header
      _
    $region3: #{tpu_custom_call.1} parent=1 // loop_header
      %s16 = sphi 0, %s20
      %p17 = scmp.ge.s32.totalorder %s16, 10
      %s23 = sphi 0, %s35
      %s24 = sphi 0, %s31
      %s25 = sphi 0, %s23
      %s26 = sphi 0, %s24
      %s27 = sphi 0, %s25
      %s28 = sphi 0, %s26
      %s36 = sphi 0, %s36
      %s38 = sphi 0, %s36
      %s39 = sphi 0, %s38
      %s53 = sphi 0, %s39
      %s61 = sphi 0, %s63
      %s64 = sphi 0, %s61
      %s65 = sphi 0, %s64
      %s81 = sphi 0, %s65
      %s87 = sphi 0, %s89
      %s90 = sphi 0, %s87
      %s91 = sphi 0, %s90
      %s107 = sphi 0, %s91
      %s113 = sphi 0, %s115
      %s116 = sphi 0, %s113
      %s117 = sphi 0, %s116
      %s133 = sphi 0, %s117
    $region4: #{tpu_custom_call.1} parent=1 // loop_header_branch
      %19 = sbr.rel (%p17) target = $region8
    $region5: #{tpu_custom_call.1} parent=1 // loop_body
      %s21 = ssub.s32 %s16, 1
      %s22 = ssub.s32 %s16, 2
      %s29 = sadd.s32 1, %s24
      %p30 = scmp.ge.s32.totalorder %s29, 4
      %s31 = scalar_select %p30, 0, %s29
      %s32 = sadd.s32 1, %s23
      %s33 = scalar_select %p30, %s32, %s23
      %p34 = scmp.ge.s32.totalorder %s33, 2
      %s35 = scalar_select %p34, 0, %s33
      %s37 = sadd.s32 %s36, 1
      %p40 = scmp.eq.s32.totalorder %s16, 7
      %p41 = scmp.ne.s32.totalorder %s36, %s38
      %p42 = scmp.eq.s32.totalorder %s16, 0
      %p43 = por %p41, %p42
      %p44 = scmp.ne.s32.totalorder %s36, %s38
      %p45 = scmp.eq.s32.totalorder %s21, 7
      %p46 = por %p44, %p45
      %p47 = scmp.ne.s32.totalorder %s38, %s39
      %p48 = scmp.eq.s32.totalorder %s21, 0
      %p49 = por %p47, %p48
      %p50 = scmp.ne.s32.totalorder %s38, %s39
      %p51 = scmp.eq.s32.totalorder %s22, 7
      %p52 = por %p50, %p51
      %p54 = scmp.ne.s32.totalorder %s39, %s53
      %p55 = scmp.eq.s32.totalorder %s22, 0
      %p56 = por %p54, %p55
      %s57 = ssub.s32 %s24, %s31
      %s58 = ssub.s32 %s23, %s35
      %s59 = sor.u32 %s57, %s58
      %p60 = scmp.eq.s32.totalorder %s59, 0
      %s62 = sadd.s32 %s61, 1
      %s63 = scalar_select %p60, %s61, %s62
      %p66 = pneg %p60
      %p67 = scmp.eq.s32.totalorder %s16, 7
      %p68 = por %p66, %p67
      %p69 = scmp.ne.s32.totalorder %s61, %s64
      %p70 = scmp.eq.s32.totalorder %s16, 0
      %p71 = por %p69, %p70
      %p72 = scmp.ne.s32.totalorder %s61, %s64
      %p73 = scmp.eq.s32.totalorder %s21, 7
      %p74 = por %p72, %p73
      %p75 = scmp.ne.s32.totalorder %s64, %s65
      %p76 = scmp.eq.s32.totalorder %s21, 0
      %p77 = por %p75, %p76
      %p78 = scmp.ne.s32.totalorder %s64, %s65
      %p79 = scmp.eq.s32.totalorder %s22, 7
      %p80 = por %p78, %p79
      %p82 = scmp.ne.s32.totalorder %s65, %s81
      %p83 = scmp.eq.s32.totalorder %s22, 0
      %p84 = por %p82, %p83
      %s85 = ssub.s32 %s23, %s35
      %p86 = scmp.eq.s32.totalorder %s85, 0
      %s88 = sadd.s32 %s87, 1
      %s89 = scalar_select %p86, %s87, %s88
      %p92 = pneg %p86
      %p93 = scmp.eq.s32.totalorder %s16, 7
      %p94 = por %p92, %p93
      %p95 = scmp.ne.s32.totalorder %s87, %s90
      %p96 = scmp.eq.s32.totalorder %s16, 0
      %p97 = por %p95, %p96
      %p98 = scmp.ne.s32.totalorder %s87, %s90
      %p99 = scmp.eq.s32.totalorder %s21, 7
      %p100 = por %p98, %p99
      %p101 = scmp.ne.s32.totalorder %s90, %s91
      %p102 = scmp.eq.s32.totalorder %s21, 0
      %p103 = por %p101, %p102
      %p104 = scmp.ne.s32.totalorder %s90, %s91
      %p105 = scmp.eq.s32.totalorder %s22, 7
      %p106 = por %p104, %p105
      %p108 = scmp.ne.s32.totalorder %s91, %s107
      %p109 = scmp.eq.s32.totalorder %s22, 0
      %p110 = por %p108, %p109
      %s111 = ssub.s32 %s23, %s35
      %p112 = scmp.eq.s32.totalorder %s111, 0
      %s114 = sadd.s32 %s113, 1
      %s115 = scalar_select %p112, %s113, %s114
      %p118 = pneg %p112
      %p119 = scmp.eq.s32.totalorder %s16, 7
      %p120 = por %p118, %p119
      %p121 = scmp.ne.s32.totalorder %s113, %s116
      %p122 = scmp.eq.s32.totalorder %s16, 0
      %p123 = por %p121, %p122
      %p124 = scmp.ne.s32.totalorder %s113, %s116
      %p125 = scmp.eq.s32.totalorder %s21, 7
      %p126 = por %p124, %p125
      %p127 = scmp.ne.s32.totalorder %s116, %s117
      %p128 = scmp.eq.s32.totalorder %s21, 0
      %p129 = por %p127, %p128
      %p130 = scmp.ne.s32.totalorder %s116, %s117
      %p131 = scmp.eq.s32.totalorder %s22, 7
      %p132 = por %p130, %p131
      %p134 = scmp.ne.s32.totalorder %s117, %s133
      %p135 = scmp.eq.s32.totalorder %s22, 0
      %p136 = por %p134, %p135
      %p137 = scmp.le.s32.totalorder 1, %s16
      %p138 = scmp.lt.s32.totalorder %s16, 9
      %p139 = pnand %p137, %p138
      %p140 = pneg %p139
      // Predicated region
      $region9: #{tpu_custom_call.1} parent=5 // pred_check
        _
      $region10: #{tpu_custom_call.1} parent=5 // pred_check_branch
        %142 = sbr.rel (%p139) target = $region12
      $region11: #{tpu_custom_call.1} parent=5 // pred_region
        %s143 = ssub.s32 %s16, 1
        // Predicated region
        $region13: #{tpu_custom_call.1} parent=11 // pred_check
          %p144 = pneg %p49
        $region14: #{tpu_custom_call.1} parent=11 // pred_check_branch
          %146 = sbr.rel (%p144) target = $region16
        $region15: #{tpu_custom_call.1} parent=11 // pred_region
          %s148 = ssub.s32 1024, 1024
          %149 = vsyncadd [#allocation4], %s148
          %s151 = sshll.u32 [#allocation3], 4
          %s152 = int_to_ptr.vmem [resolvable:$true] %s151
          %154 = dma.hbm_to_vmem [thread:$0]  %s0, 1024, %s152, [#allocation4]
        $region16: #{tpu_custom_call.1} parent=11 // pred_fallthru
          _
      $region12: #{tpu_custom_call.1} parent=5 // pred_fallthru
        _
      %p155 = scmp.lt.s32.totalorder %s16, 8
      // Predicated region
      $region17: #{tpu_custom_call.1} parent=5 // pred_check
        %p156 = pneg %p155
      $region18: #{tpu_custom_call.1} parent=5 // pred_check_branch
        %158 = sbr.rel (%p156) target = $region20
      $region19: #{tpu_custom_call.1} parent=5 // pred_region
        // Predicated region
        $region21: #{tpu_custom_call.1} parent=19 // pred_check
          %p159 = pneg %p71
        $region22: #{tpu_custom_call.1} parent=19 // pred_check_branch
          %161 = sbr.rel (%p159) target = $region24
        $region23: #{tpu_custom_call.1} parent=19 // pred_region
          %s162 = sand.u32 %s16, 1
          %s163 = scalar_lea.sflag [#allocation7], %s162
          %s164 = sand.u32 %s61, 1
          %s165 = smul.addr %s164, 512
          %s166 = scalar_lea.vmem [#allocation6], %s165
          %s167 = smul.u32 32, %s24
          %s168 = smul.u32 2, %s23
          %s170 = ssub.s32 8192, 8192
          %171 = vsyncadd %s163, %s170
          %s172 = smul.addr %s167, 4
          %s173 = sadd.s32 %s168, %s172
          %s174 = smul.addr %s173, 128
          %s175 = scalar_lea.hbm %s1, %s174
          %s176 = sshll.u32 %s166, 4
          %s177 = int_to_ptr.vmem [resolvable:$true] %s176
          %182 = dma.hbm_to_vmem [thread:$0]  %s175, 8192, %s177, %s163, 512, 256, 16
        $region24: #{tpu_custom_call.1} parent=19 // pred_fallthru
          _
        // Predicated region
        $region25: #{tpu_custom_call.1} parent=19 // pred_check
          %p183 = pneg %p97
        $region26: #{tpu_custom_call.1} parent=19 // pred_check_branch
          %185 = sbr.rel (%p183) target = $region28
        $region27: #{tpu_custom_call.1} parent=19 // pred_region
          %s186 = sand.u32 %s16, 1
          %s187 = scalar_lea.sflag [#allocation7], %s186
          %s188 = sand.u32 %s87, 1
          %s189 = smul.addr %s188, 2
          %s190 = scalar_lea.vmem [#allocation8], %s189
          %s191 = smul.u32 2, %s23
          %s193 = ssub.s32 32, 32
          %194 = vsyncadd %s187, %s193
          %s195 = smul.addr %s191, 16
          %s196 = scalar_lea.hbm %s2, %s195
          %s198 = sshll.u32 %s190, 4
          %s199 = int_to_ptr.vmem [resolvable:$true] %s198
          %201 = dma.hbm_to_vmem [thread:$0]  %s196, 32, %s199, %s187
        $region28: #{tpu_custom_call.1} parent=19 // pred_fallthru
          _
      $region20: #{tpu_custom_call.1} parent=5 // pred_fallthru
        _
      %p202 = scmp.le.s32.totalorder 1, %s16
      %p203 = scmp.lt.s32.totalorder %s16, 9
      %p204 = pnand %p202, %p203
      %p205 = pneg %p204
      // Predicated region
      $region29: #{tpu_custom_call.1} parent=5 // pred_check
        _
      $region30: #{tpu_custom_call.1} parent=5 // pred_check_branch
        %207 = sbr.rel (%p204) target = $region32
      $region31: #{tpu_custom_call.1} parent=5 // pred_region
        %s208 = ssub.s32 %s16, 1
        // Predicated region
        $region33: #{tpu_custom_call.1} parent=31 // pred_check
          %p209 = pneg %p49
        $region34: #{tpu_custom_call.1} parent=31 // pred_check_branch
          %211 = sbr.rel (%p209) target = $region36
        $region35: #{tpu_custom_call.1} parent=31 // pred_region
          %212 = dma.done [#allocation4], 1024
        $region36: #{tpu_custom_call.1} parent=31 // pred_fallthru
          _
        %s213 = sand.u32 %s21, 1
        %s214 = scalar_lea.sflag [#allocation7], %s213
        %s215 = sand.u32 %s64, 1
        %s216 = smul.addr %s215, 512
        %s217 = scalar_lea.vmem [#allocation6], %s216
        // Predicated region
        $region37: #{tpu_custom_call.1} parent=31 // pred_check
          %p218 = pneg %p77
        $region38: #{tpu_custom_call.1} parent=31 // pred_check_branch
          %220 = sbr.rel (%p218) target = $region40
        $region39: #{tpu_custom_call.1} parent=31 // pred_region
          %221 = dma.done %s214, 8192
        $region40: #{tpu_custom_call.1} parent=31 // pred_fallthru
          _
        %s222 = sand.u32 %s21, 1
        %s223 = scalar_lea.sflag [#allocation7], %s222
        %s224 = sand.u32 %s90, 1
        %s225 = smul.addr %s224, 2
        %s226 = scalar_lea.vmem [#allocation8], %s225
        // Predicated region
        $region41: #{tpu_custom_call.1} parent=31 // pred_check
          %p227 = pneg %p103
        $region42: #{tpu_custom_call.1} parent=31 // pred_check_branch
          %229 = sbr.rel (%p227) target = $region44
        $region43: #{tpu_custom_call.1} parent=31 // pred_region
          %230 = dma.done %s223, 32
        $region44: #{tpu_custom_call.1} parent=31 // pred_fallthru
          _
        %p231 = pneg %p49
        %p232 = pneg %p46
        %s233 = sand.u32 %s21, 1
        %s234 = scalar_lea.sflag [#allocation7], %s233
        %s235 = sand.u32 %s64, 1
        %s236 = smul.addr %s235, 512
        %s237 = scalar_lea.vmem [#allocation6], %s236
        %p238 = pneg %p77
        %p239 = pneg %p74
        %s240 = sand.u32 %s21, 1
        %s241 = scalar_lea.sflag [#allocation7], %s240
        %s242 = sand.u32 %s90, 1
        %s243 = smul.addr %s242, 2
        %s244 = scalar_lea.vmem [#allocation8], %s243
        %p245 = pneg %p103
        %p246 = pneg %p100
        %p247 = pneg %p129
        %p248 = pneg %p126
        %s249 = sand.u32 %s116, 1
        %s250 = scalar_lea.sflag [#allocation5], %s249
        %s251 = sand.u32 %s116, 1
        %s252 = smul.addr %s251, 16
        %s253 = scalar_lea.vmem [#allocation9], %s252
        %s254 = smul.u32 32, %s26
        %s255 = smul.u32 2, %s25
        %s256 = smul.u32 2, %s25
        %s257 = smul.u32 2, %s25
        %p258 = scmp.eq.s32.totalorder %s26, 0
        // Predicated region
        $region45: #{tpu_custom_call.1} parent=31 // pred_check
          %p259 = pneg %p258
        $region46: #{tpu_custom_call.1} parent=31 // pred_check_branch
          %261 = sbr.rel (%p259) target = $region48
        $region47: #{tpu_custom_call.1} parent=31 // pred_region
          %262 = vst [vmem:[#allocation2] sm:$0xff] 0.0
          %263 = vst [vmem:[#allocation2 + $0x8] sm:$0xff] 0.0
        $region48: #{tpu_custom_call.1} parent=31 // pred_fallthru
          _
        %s264 = smul.u32 %s26, 256
        %s265 = sshra.s32 %s264, 7
        %s266 = sand.u32 %s264, 127
        %s267 = smul.addr %s265, 8
        %s268 = scalar_lea.vmem [#allocation3], %s267
        %v269 = vld [vmem:[%s268] sm:$0xff]
        %v270 = vld [vmem:[%s268 + $0x8] sm:$0xff]
        %v271 = vld [vmem:[#allocation2] sm:$0xff]
        %v272 = vld [vmem:[#allocation2 + $0x8] sm:$0xff]
        %v273 = vld [vmem:[%s217] sm:$0xff]
        %v274 = vld [vmem:[%s217 + $0x8] sm:$0xff]
        %v275 = vld [vmem:[%s217 + $0x10] sm:$0xff]
        %v276 = vld [vmem:[%s217 + $0x18] sm:$0xff]
        %v277 = vld [vmem:[%s217 + $0x20] sm:$0xff]
        %v278 = vld [vmem:[%s217 + $0x28] sm:$0xff]
        %v279 = vld [vmem:[%s217 + $0x30] sm:$0xff]
        %v280 = vld [vmem:[%s217 + $0x38] sm:$0xff]
        %v281 = vld [vmem:[%s217 + $0x40] sm:$0xff]
        %v282 = vld [vmem:[%s217 + $0x48] sm:$0xff]
        %v283 = vld [vmem:[%s217 + $0x50] sm:$0xff]
        %v284 = vld [vmem:[%s217 + $0x58] sm:$0xff]
        %v285 = vld [vmem:[%s217 + $0x60] sm:$0xff]
        %v286 = vld [vmem:[%s217 + $0x68] sm:$0xff]
        %v287 = vld [vmem:[%s217 + $0x70] sm:$0xff]
        %v288 = vld [vmem:[%s217 + $0x78] sm:$0xff]
        %v289 = vld [vmem:[%s217 + $0x80] sm:$0xff]
        %v290 = vld [vmem:[%s217 + $0x88] sm:$0xff]
        %v291 = vld [vmem:[%s217 + $0x90] sm:$0xff]
        %v292 = vld [vmem:[%s217 + $0x98] sm:$0xff]
        %v293 = vld [vmem:[%s217 + $0xa0] sm:$0xff]
        %v294 = vld [vmem:[%s217 + $0xa8] sm:$0xff]
        %v295 = vld [vmem:[%s217 + $0xb0] sm:$0xff]
        %v296 = vld [vmem:[%s217 + $0xb8] sm:$0xff]
        %v297 = vld [vmem:[%s217 + $0xc0] sm:$0xff]
        %v298 = vld [vmem:[%s217 + $0xc8] sm:$0xff]
        %v299 = vld [vmem:[%s217 + $0xd0] sm:$0xff]
        %v300 = vld [vmem:[%s217 + $0xd8] sm:$0xff]
        %v301 = vld [vmem:[%s217 + $0xe0] sm:$0xff]
        %v302 = vld [vmem:[%s217 + $0xe8] sm:$0xff]
        %v303 = vld [vmem:[%s217 + $0xf0] sm:$0xff]
        %v304 = vld [vmem:[%s217 + $0xf8] sm:$0xff]
        %v305 = vld [vmem:[%s217 + $0x100] sm:$0xff]
        %v306 = vld [vmem:[%s217 + $0x108] sm:$0xff]
        %v307 = vld [vmem:[%s217 + $0x110] sm:$0xff]
        %v308 = vld [vmem:[%s217 + $0x118] sm:$0xff]
        %v309 = vld [vmem:[%s217 + $0x120] sm:$0xff]
        %v310 = vld [vmem:[%s217 + $0x128] sm:$0xff]
        %v311 = vld [vmem:[%s217 + $0x130] sm:$0xff]
        %v312 = vld [vmem:[%s217 + $0x138] sm:$0xff]
        %v313 = vld [vmem:[%s217 + $0x140] sm:$0xff]
        %v314 = vld [vmem:[%s217 + $0x148] sm:$0xff]
        %v315 = vld [vmem:[%s217 + $0x150] sm:$0xff]
        %v316 = vld [vmem:[%s217 + $0x158] sm:$0xff]
        %v317 = vld [vmem:[%s217 + $0x160] sm:$0xff]
        %v318 = vld [vmem:[%s217 + $0x168] sm:$0xff]
        %v319 = vld [vmem:[%s217 + $0x170] sm:$0xff]
        %v320 = vld [vmem:[%s217 + $0x178] sm:$0xff]
        %v321 = vld [vmem:[%s217 + $0x180] sm:$0xff]
        %v322 = vld [vmem:[%s217 + $0x188] sm:$0xff]
        %v323 = vld [vmem:[%s217 + $0x190] sm:$0xff]
        %v324 = vld [vmem:[%s217 + $0x198] sm:$0xff]
        %v325 = vld [vmem:[%s217 + $0x1a0] sm:$0xff]
        %v326 = vld [vmem:[%s217 + $0x1a8] sm:$0xff]
        %v327 = vld [vmem:[%s217 + $0x1b0] sm:$0xff]
        %v328 = vld [vmem:[%s217 + $0x1b8] sm:$0xff]
        %v329 = vld [vmem:[%s217 + $0x1c0] sm:$0xff]
        %v330 = vld [vmem:[%s217 + $0x1c8] sm:$0xff]
        %v331 = vld [vmem:[%s217 + $0x1d0] sm:$0xff]
        %v332 = vld [vmem:[%s217 + $0x1d8] sm:$0xff]
        %v333 = vld [vmem:[%s217 + $0x1e0] sm:$0xff]
        %v334 = vld [vmem:[%s217 + $0x1e8] sm:$0xff]
        %v335 = vld [vmem:[%s217 + $0x1f0] sm:$0xff]
        %v336 = vld [vmem:[%s217 + $0x1f8] sm:$0xff]
        %337 = vmatprep.subr.mxu0 %v274
        %338 = vmatpush1.msra.mxu0 %v273
        %339 = vmatprep.subr.mxu0 %v276
        %340 = vmatpush1.msra.mxu0 %v275
        %341 = vmatprep.subr.mxu0 %v278
        %342 = vmatpush1.msra.mxu0 %v277
        %343 = vmatprep.subr.mxu0 %v280
        %344 = vmatpush1.msra.mxu0 %v279
        %345 = vmatprep.subr.mxu0 %v282
        %346 = vmatpush1.msra.mxu0 %v281
        %347 = vmatprep.subr.mxu0 %v284
        %348 = vmatpush1.msra.mxu0 %v283
        %349 = vmatprep.subr.mxu0 %v286
        %350 = vmatpush1.msra.mxu0 %v285
        %351 = vmatprep.subr.mxu0 %v288
        %352 = vmatpush1.msra.mxu0 %v287
        %353 = vmatprep.subr.mxu0 %v290
        %354 = vmatpush1.msra.mxu0 %v289
        %355 = vmatprep.subr.mxu0 %v292
        %356 = vmatpush1.msra.mxu0 %v291
        %357 = vmatprep.subr.mxu0 %v294
        %358 = vmatpush1.msra.mxu0 %v293
        %359 = vmatprep.subr.mxu0 %v296
        %360 = vmatpush1.msra.mxu0 %v295
        %361 = vmatprep.subr.mxu0 %v298
        %362 = vmatpush1.msra.mxu0 %v297
        %363 = vmatprep.subr.mxu0 %v300
        %364 = vmatpush1.msra.mxu0 %v299
        %365 = vmatprep.subr.mxu0 %v302
        %366 = vmatpush1.msra.mxu0 %v301
        %367 = vmatprep.subr.mxu0 %v304
        %368 = vmatpush1.msra.mxu0 %v303
        %369 = vmatprep.subr.mxu0 %v306
        %370 = vmatpush1.msra.mxu0 %v305
        %371 = vmatprep.subr.mxu0 %v308
        %372 = vmatpush1.msra.mxu0 %v307
        %373 = vmatprep.subr.mxu0 %v310
        %374 = vmatpush1.msra.mxu0 %v309
        %375 = vmatprep.subr.mxu0 %v312
        %376 = vmatpush1.msra.mxu0 %v311
        %377 = vmatprep.subr.mxu0 %v314
        %378 = vmatpush1.msra.mxu0 %v313
        %379 = vmatprep.subr.mxu0 %v316
        %380 = vmatpush1.msra.mxu0 %v315
        %381 = vmatprep.subr.mxu0 %v318
        %382 = vmatpush1.msra.mxu0 %v317
        %383 = vmatprep.subr.mxu0 %v320
        %384 = vmatpush1.msra.mxu0 %v319
        %385 = vmatprep.subr.mxu0 %v322
        %386 = vmatpush1.msra.mxu0 %v321
        %387 = vmatprep.subr.mxu0 %v324
        %388 = vmatpush1.msra.mxu0 %v323
        %389 = vmatprep.subr.mxu0 %v326
        %390 = vmatpush1.msra.mxu0 %v325
        %391 = vmatprep.subr.mxu0 %v328
        %392 = vmatpush1.msra.mxu0 %v327
        %393 = vmatprep.subr.mxu0 %v330
        %394 = vmatpush1.msra.mxu0 %v329
        %395 = vmatprep.subr.mxu0 %v332
        %396 = vmatpush1.msra.mxu0 %v331
        %397 = vmatprep.subr.mxu0 %v334
        %398 = vmatpush1.msra.mxu0 %v333
        %399 = vmatprep.subr.mxu0 %v336
        %400 = vmatpush1.msra.mxu0 %v335
        %401 = vmatprep.mubr.f32.mxu0 %v270
        %402 = vmatmul.mubr.f32.gmra.mrb[0].mxu0 %v269
        %v403 = vpop.f32.mrb[0].mxu0
        %v404 = vadd.f32 0.0, %v403
        %v405 = vpop.f32.mrb[0].mxu0
        %v406 = vadd.f32 0.0, %v405
        %407 = vdwg.mxu0
        %v408 = vadd.f32 %v271, %v404
        %v409 = vadd.f32 %v272, %v406
        %410 = vst [vmem:[#allocation2] sm:$0xff] %v408
        %411 = vst [vmem:[#allocation2 + $0x8] sm:$0xff] %v409
        %p412 = scmp.eq.s32.totalorder %s26, 3
        // Predicated region
        $region49: #{tpu_custom_call.1} parent=31 // pred_check
          %p413 = pneg %p412
        $region50: #{tpu_custom_call.1} parent=31 // pred_check_branch
          %415 = sbr.rel (%p413) target = $region52
        $region51: #{tpu_custom_call.1} parent=31 // pred_region
          %v416 = vld [vmem:[#allocation2] sm:$0xff]
          %v417 = vld [vmem:[#allocation2 + $0x8] sm:$0xff]
          %v418 = vld [vmem:[%s226] sm:$0x3]
          %v420 = vlaneseq
          %v421 = vshrl.u32 %v420, 7
          %v422 = vsub.s32 0, %v421
          %v423 = vrot.slane %v418, %v422
          %v424 = vlaneseq
          %v425 = vshrl.u32 %v424, 7
          %v426 = vsub.s32 1, %v425
          %v427 = vrot.slane %v418, %v426
          %v430 = vadd.f32 %v416, %v423
          %v431 = vadd.f32 %v417, %v427
          %432 = vst [vmem:[%s253] sm:$0xff] %v430
          %433 = vst [vmem:[%s253 + $0x8] sm:$0xff] %v431
        $region52: #{tpu_custom_call.1} parent=31 // pred_fallthru
          _
        %s434 = sand.u32 %s116, 1
        %s435 = scalar_lea.sflag [#allocation5], %s434
        %s436 = sand.u32 %s116, 1
        %s437 = smul.addr %s436, 16
        %s438 = scalar_lea.vmem [#allocation9], %s437
        // Predicated region
        $region53: #{tpu_custom_call.1} parent=31 // pred_check
          %p439 = pneg %p126
        $region54: #{tpu_custom_call.1} parent=31 // pred_check_branch
          %441 = sbr.rel (%p439) target = $region56
        $region55: #{tpu_custom_call.1} parent=31 // pred_region
          %s442 = smul.u32 2, %s25
          %s444 = ssub.s32 256, 256
          %445 = vsyncadd %s435, %s444
          %s446 = smul.addr %s442, 128
          %s447 = scalar_lea.hbm %s3, %s446
          %s449 = sshll.u32 %s438, 4
          %s450 = int_to_ptr.vmem [resolvable:$true] %s449
          %452 = dma.vmem_to_hbm [thread:$0]  %s450, 256, %s447, %s435
        $region56: #{tpu_custom_call.1} parent=31 // pred_fallthru
          _
      $region32: #{tpu_custom_call.1} parent=5 // pred_fallthru
        _
      %p453 = scmp.le.s32.totalorder 2, %s16
      // Predicated region
      $region57: #{tpu_custom_call.1} parent=5 // pred_check
        %p454 = pneg %p453
      $region58: #{tpu_custom_call.1} parent=5 // pred_check_branch
        %456 = sbr.rel (%p454) target = $region60
      $region59: #{tpu_custom_call.1} parent=5 // pred_region
        %s457 = ssub.s32 %s16, 2
        // Predicated region
        $region61: #{tpu_custom_call.1} parent=59 // pred_check
          %p458 = pneg %p132
        $region62: #{tpu_custom_call.1} parent=59 // pred_check_branch
          %460 = sbr.rel (%p458) target = $region64
        $region63: #{tpu_custom_call.1} parent=59 // pred_region
          %s461 = sand.u32 %s117, 1
          %s462 = scalar_lea.sflag [#allocation5], %s461
          %s463 = sand.u32 %s117, 1
          %s464 = smul.addr %s463, 16
          %s465 = scalar_lea.vmem [#allocation9], %s464
          %466 = dma.done %s462, 256
        $region64: #{tpu_custom_call.1} parent=59 // pred_fallthru
          _
      $region60: #{tpu_custom_call.1} parent=5 // pred_fallthru
        _
    $region6: #{tpu_custom_call.1} parent=1 // loop_footer
      %s20 = sadd.s32 1, %s16
    $region7: #{tpu_custom_call.1} parent=1 // loop_footer_branch
      %15 = sbr.rel target = $region3
    $region8: #{tpu_custom_call.1} parent=1 // loop_exit
      _
    %467 = vsyncpa [#allocation4], 1
    %s468 = scalar_lea.sflag [#allocation4], 1
    %469 = vsyncpa %s468, 1
    %470 = vsyncpa [#allocation7], 1
    %s471 = scalar_lea.sflag [#allocation7], 1
    %472 = vsyncpa %s471, 1
    %473 = vsyncpa [#allocation5], 1
    %s474 = scalar_lea.sflag [#allocation5], 1
    %475 = vsyncpa %s474, 1

</llo_original>
